<compile_context>
chip_gen: v5e
topology: v5e:2x2
jax: 0.10.0
libtpu: 0.0.40
codegen_flags: <defaults>
</compile_context>

<pallas_src>
import functools

import jax
import jax.numpy as jnp
from jax.experimental import pallas as pl
from jax.experimental.pallas import tpu as pltpu


def _sobel_kernel(x_ref, o_ref, *, H, W):
    """x_ref / o_ref: (B_blk, H*W) row-major-flattened images."""
    L = H * W
    x = x_ref[...].astype(jnp.float32)

    lane = jax.lax.broadcasted_iota(jnp.int32, x.shape, 1)   # flat pixel index
    col = lane % W                                           # column within image

    # ---- vertical pass: row +/-1 neighbors == lane shift by +/-W -----------
    # roll(shift=W)   : out[k] = x[k-W] -> x[i-1, j]  (wrap at i==0   -> zero pad)
    # roll(shift=L-W) : out[k] = x[k+W] -> x[i+1, j]  (wrap at i==H-1 -> zero pad)
    x_up = jnp.where(lane < W, 0.0, pltpu.roll(x, shift=W, axis=1))
    x_dn = jnp.where(lane >= (H - 1) * W, 0.0, pltpu.roll(x, shift=L - W, axis=1))
    s = x_up + 2.0 * x + x_dn      # (1, 2, 1) row smoothing   -> feeds grad_x
    d = x_dn - x_up                # (-1, 0, 1) row difference -> feeds grad_y

    # ---- horizontal pass: col +/-1 neighbors == lane shift by +/-1 ---------
    left = col == 0
    right = col == W - 1
    s_l = jnp.where(left, 0.0, pltpu.roll(s, shift=1, axis=1))       # s[i, j-1]
    s_r = jnp.where(right, 0.0, pltpu.roll(s, shift=L - 1, axis=1))  # s[i, j+1]
    d_l = jnp.where(left, 0.0, pltpu.roll(d, shift=1, axis=1))
    d_r = jnp.where(right, 0.0, pltpu.roll(d, shift=L - 1, axis=1))

    gx = s_r - s_l                 # == F.conv2d(img, sobel_x, padding=1)
    gy = d_l + 2.0 * d + d_r       # == F.conv2d(img, sobel_y, padding=1)

    o_ref[...] = jnp.sqrt(gx * gx + gy * gy + 1e-6).astype(o_ref.dtype)


def _pick_batch_block(N, L, itemsize):
    """Images per grid step: big enough to amortize the ~0.35us per-step cost,
    small enough to sit comfortably in VMEM, a multiple of 8 (or == N) so the
    sublane dim obeys the (8,128) tiling rule, and leaving >= 2 grid steps for
    v7x megacore sharding whenever the batch allows it."""
    if N <= 8:
        return N
    target_bytes = 1 << 20                                   # ~1 MiB input per block
    blk = max(8, (target_bytes // max(1, L * itemsize)) // 8 * 8)
    blk = min(blk, (N // 8) * 8)
    if blk * 2 > N:                                          # keep >= 2 grid steps
        blk = max(8, (pl.cdiv(N, 2) // 8) * 8)
    return blk


def sobel_filter(img):
    """img: (N, 1, H, W) -> (N, 1, H, W) Sobel gradient magnitude."""
    N, C, H, W = img.shape
    assert C == 1, "Sobel weights have in_channels=1 (matches the PyTorch module)"
    L = H * W

    x = img.reshape(N, L)                                    # metadata-only reshape
    b_blk = _pick_batch_block(N, L, jnp.dtype(img.dtype).itemsize)
    grid = (pl.cdiv(N, b_blk),)

    out = pl.pallas_call(
        functools.partial(_sobel_kernel, H=H, W=W),
        out_shape=jax.ShapeDtypeStruct((N, L), img.dtype),
        grid_spec=pltpu.PrefetchScalarGridSpec(
            num_scalar_prefetch=0,
            grid=grid,
            in_specs=[pl.BlockSpec((b_blk, L), lambda n: (n, 0))],
            out_specs=pl.BlockSpec((b_blk, L), lambda n: (n, 0)),
        ),
        compiler_params=pltpu.CompilerParams(
            dimension_semantics=("parallel",),
            vmem_limit_bytes=64 * 1024 * 1024,
        ),
    )(x)

    return out.reshape(N, 1, H, W)


def _sobel_reference(img):
    """Pure-JAX reference with the exact PyTorch-module semantics."""
    sobel_x = jnp.array([[-1, 0, 1], [-2, 0, 2], [-1, 0, 1]], dtype=jnp.float32)
    sobel_y = jnp.array([[-1, -2, -1], [0, 0, 0], [1, 2, 1]], dtype=jnp.float32)
    x = img[:, 0, :, :].astype(jnp.float32)
    xpad = jnp.pad(x, ((0, 0), (1, 1), (1, 1)))
    N, H, W = x.shape
    gx = jnp.zeros_like(x)
    gy = jnp.zeros_like(x)
    for di in range(3):
        for dj in range(3):
            win = xpad[:, di:di + H, dj:dj + W]
            gx = gx + sobel_x[di, dj] * win
            gy = gy + sobel_y[di, dj] * win
    return jnp.sqrt(gx * gx + gy * gy + 1e-6)[:, None, :, :].astype(img.dtype)


if __name__ == "__main__":
    key = jax.random.PRNGKey(0)
    # Input consistent with the module: (batch=2, channels=1, H=16, W=16)
    img = jax.random.normal(key, (2, 1, 16, 16), dtype=jnp.float32)

    out = jax.block_until_ready(sobel_filter(img))
    ref = _sobel_reference(img)

    assert out.shape == (2, 1, 16, 16)
    assert jnp.allclose(out, ref, atol=1e-5, rtol=1e-5)

    print("KERNEL_OK")
</pallas_src>

<mosaic_0001>
module attributes {stable_mosaic.version = 11 : i64} {
  func.func @_sobel_kernel(%arg0: i32, %arg1: memref<2x256xf32, #tpu.memory_space<vmem>>, %arg2: memref<2x256xf32, #tpu.memory_space<vmem>>) attributes {dimension_semantics = [#tpu.dimension_semantics<parallel>], iteration_bounds = array<i64: 1>, scalar_prefetch = 0 : i64, scratch_operands = 0 : i64, tpu.core_type = #tpu.core_type<tc>, window_params = [{transform_indices = @transform_0, window_bounds = array<i64: 2, 256>}, {transform_indices = @transform_1, window_bounds = array<i64: 2, 256>}]} {
    %c0 = arith.constant 0 : index
    %c0_0 = arith.constant 0 : index
    %0 = vector.load %arg1[%c0, %c0_0] : memref<2x256xf32, #tpu.memory_space<vmem>>, vector<2x256xf32>
    %1 = tpu.iota {dimensions = array<i32: 1>} : vector<2x256xi32>
    %c16_i32 = arith.constant 16 : i32
    %c0_i32 = arith.constant 0 : i32
    %2 = arith.cmpi eq, %c16_i32, %c0_i32 : i32
    %c1_i32 = arith.constant 1 : i32
    %3 = arith.select %2, %c1_i32, %c16_i32 : i32
    %4 = vector.broadcast %3 : i32 to vector<2x256xi32>
    %5 = arith.remsi %1, %4 : vector<2x256xi32>
    %c0_i32_1 = arith.constant 0 : i32
    %6 = vector.broadcast %c0_i32_1 : i32 to vector<2x256xi32>
    %7 = arith.cmpi ne, %5, %6 : vector<2x256xi32>
    %c0_i32_2 = arith.constant 0 : i32
    %8 = vector.broadcast %c0_i32_2 : i32 to vector<2x256xi32>
    %9 = arith.cmpi slt, %5, %8 : vector<2x256xi32>
    %c0_i32_3 = arith.constant 0 : i32
    %10 = arith.cmpi slt, %3, %c0_i32_3 : i32
    %11 = vector.broadcast %10 : i1 to vector<2x256xi1>
    %12 = vector.broadcast %11 : vector<2x256xi1> to vector<2x256xi1>
    %13 = arith.xori %9, %12 : vector<2x256xi1>
    %14 = arith.andi %13, %7 : vector<2x256xi1>
    %15 = vector.broadcast %3 : i32 to vector<2x256xi32>
    %16 = arith.addi %5, %15 : vector<2x256xi32>
    %17 = arith.select %14, %16, %5 : vector<2x256xi1>, vector<2x256xi32>
    %c16_i32_4 = arith.constant 16 : i32
    %18 = vector.broadcast %c16_i32_4 : i32 to vector<2x256xi32>
    %19 = arith.cmpi slt, %1, %18 : vector<2x256xi32>
    %c16_i32_5 = arith.constant 16 : i32
    %20 = tpu.dynamic_rotate %0 by %c16_i32_5 dim 1 : vector<2x256xf32>, i32 -> vector<2x256xf32>
    %cst = arith.constant 0.000000e+00 : f32
    %21 = vector.broadcast %cst : f32 to vector<2x256xf32>
    %22 = arith.select %19, %21, %20 : vector<2x256xi1>, vector<2x256xf32>
    %c240_i32 = arith.constant 240 : i32
    %23 = vector.broadcast %c240_i32 : i32 to vector<2x256xi32>
    %24 = arith.cmpi sge, %1, %23 : vector<2x256xi32>
    %c240_i32_6 = arith.constant 240 : i32
    %25 = tpu.dynamic_rotate %0 by %c240_i32_6 dim 1 : vector<2x256xf32>, i32 -> vector<2x256xf32>
    %cst_7 = arith.constant 0.000000e+00 : f32
    %26 = vector.broadcast %cst_7 : f32 to vector<2x256xf32>
    %27 = arith.select %24, %26, %25 : vector<2x256xi1>, vector<2x256xf32>
    %cst_8 = arith.constant 2.000000e+00 : f32
    %28 = vector.broadcast %cst_8 : f32 to vector<2x256xf32>
    %29 = arith.mulf %28, %0 : vector<2x256xf32>
    %30 = arith.addf %22, %29 : vector<2x256xf32>
    %31 = arith.addf %30, %27 : vector<2x256xf32>
    %32 = arith.subf %27, %22 : vector<2x256xf32>
    %c0_i32_9 = arith.constant 0 : i32
    %33 = vector.broadcast %c0_i32_9 : i32 to vector<2x256xi32>
    %34 = arith.cmpi eq, %17, %33 : vector<2x256xi32>
    %c15_i32 = arith.constant 15 : i32
    %35 = vector.broadcast %c15_i32 : i32 to vector<2x256xi32>
    %36 = arith.cmpi eq, %17, %35 : vector<2x256xi32>
    %c1_i32_10 = arith.constant 1 : i32
    %37 = tpu.dynamic_rotate %31 by %c1_i32_10 dim 1 : vector<2x256xf32>, i32 -> vector<2x256xf32>
    %cst_11 = arith.constant 0.000000e+00 : f32
    %38 = vector.broadcast %cst_11 : f32 to vector<2x256xf32>
    %39 = arith.select %34, %38, %37 : vector<2x256xi1>, vector<2x256xf32>
    %c255_i32 = arith.constant 255 : i32
    %40 = tpu.dynamic_rotate %31 by %c255_i32 dim 1 : vector<2x256xf32>, i32 -> vector<2x256xf32>
    %cst_12 = arith.constant 0.000000e+00 : f32
    %41 = vector.broadcast %cst_12 : f32 to vector<2x256xf32>
    %42 = arith.select %36, %41, %40 : vector<2x256xi1>, vector<2x256xf32>
    %c1_i32_13 = arith.constant 1 : i32
    %43 = tpu.dynamic_rotate %32 by %c1_i32_13 dim 1 : vector<2x256xf32>, i32 -> vector<2x256xf32>
    %cst_14 = arith.constant 0.000000e+00 : f32
    %44 = vector.broadcast %cst_14 : f32 to vector<2x256xf32>
    %45 = arith.select %34, %44, %43 : vector<2x256xi1>, vector<2x256xf32>
    %c255_i32_15 = arith.constant 255 : i32
    %46 = tpu.dynamic_rotate %32 by %c255_i32_15 dim 1 : vector<2x256xf32>, i32 -> vector<2x256xf32>
    %cst_16 = arith.constant 0.000000e+00 : f32
    %47 = vector.broadcast %cst_16 : f32 to vector<2x256xf32>
    %48 = arith.select %36, %47, %46 : vector<2x256xi1>, vector<2x256xf32>
    %49 = arith.subf %42, %39 : vector<2x256xf32>
    %cst_17 = arith.constant 2.000000e+00 : f32
    %50 = vector.broadcast %cst_17 : f32 to vector<2x256xf32>
    %51 = arith.mulf %50, %32 : vector<2x256xf32>
    %52 = arith.addf %45, %51 : vector<2x256xf32>
    %53 = arith.addf %52, %48 : vector<2x256xf32>
    %54 = arith.mulf %49, %49 : vector<2x256xf32>
    %55 = arith.mulf %53, %53 : vector<2x256xf32>
    %56 = arith.addf %54, %55 : vector<2x256xf32>
    %cst_18 = arith.constant 9.99999997E-7 : f32
    %57 = vector.broadcast %cst_18 : f32 to vector<2x256xf32>
    %58 = arith.addf %56, %57 : vector<2x256xf32>
    %59 = math.sqrt %58 : vector<2x256xf32>
    %c0_19 = arith.constant 0 : index
    %c0_20 = arith.constant 0 : index
    %60 = vector.load %arg2[%c0_19, %c0_20] : memref<2x256xf32, #tpu.memory_space<vmem>>, vector<2x256xf32>
    tpu.vector_store %arg2[%c0_19, %c0_20], %59 {strides = array<i32>} : memref<2x256xf32, #tpu.memory_space<vmem>>, vector<2x256xf32>,
    return
  }
  func.func @transform_0(%arg0: i32) -> (i32, i32) {
    %c0_i32 = arith.constant 0 : i32
    %c0_i32_0 = arith.constant 0 : i32
    return %arg0, %c0_i32 : i32, i32
  }
  func.func @transform_1(%arg0: i32) -> (i32, i32) {
    %c0_i32 = arith.constant 0 : i32
    %c0_i32_0 = arith.constant 0 : i32
    return %arg0, %c0_i32 : i32, i32
  }
}

</mosaic_0001>

<llo_original>
// kernel: tpu_custom_call.1
$region0: #{tpu_custom_call.1}
  #allocation0 [shape = 'u32[]', space=smem, size = 0x4, offset = 0x4, fixed_abs, tag = 'smem constant byte address 0x4 - core index']
  #allocation1 [shape = 'u32[72,128]{1,0:T(1,128)}', space=vmem, size = 0x9000, scoped, tag = 'internal scratch']
  %s0 = inlined_call_operand.hbm [shape: f32[2,256], index: 0, kind: input, shape index: {}]
  %s1 = inlined_call_operand.hbm [shape: f32[2,256], index: 1, kind: output, shape index: {}]
  %s2 = sld [smem:[#allocation0]]
  $region18: #{tpu_custom_call.1} parent=0
    _
  %s4 = ssub.s32 1, %s2
  %s5 = scalar_select 0, %s4, %s2
  $region1: #{tpu_custom_call.1} parent=0
    #allocation2 [shape = 'u8[2048]{0}', space=vmem, size = 0x800, scoped, tag = 'input window, operand 0, single buffered']
    #allocation3 [shape = 's32[1]{0}', space=sflag, size = 0x4, scoped, tag = 'scoped memory for tpu_custom_call.1']
    #allocation4 [shape = 's32[1]{0}', space=sflag, size = 0x4, scoped, tag = 'scoped memory for tpu_custom_call.1']
    #allocation5 [shape = 'u8[2048]{0}', space=vmem, size = 0x800, scoped, tag = 'output window, operand 0, single buffered']
    %6 = vsyncpa [#allocation3], 0
    %7 = vsyncpa [#allocation4], 0
    // Predicated region
    $region2: #{tpu_custom_call.1} parent=1 // pred_check
      _
    $region3: #{tpu_custom_call.1} parent=1 // pred_check_branch
      %9 = sbr.rel (0) target = $region5
    $region4: #{tpu_custom_call.1} parent=1 // pred_region
      %11 = vsyncadd [#allocation3], 0
      %s13 = sshll.u32 %s0, 4
      %s14 = int_to_ptr.hbm [resolvable:$true] %s13
      %s15 = sshll.u32 [#allocation2], 4
      %s16 = int_to_ptr.vmem [resolvable:$true] %s15
      %18 = dma.hbm_to_vmem [thread:$0]  %s14, 64, %s16, [#allocation3]
    $region5: #{tpu_custom_call.1} parent=1 // pred_fallthru
      _
    // Predicated region
    $region6: #{tpu_custom_call.1} parent=1 // pred_check
      _
    $region7: #{tpu_custom_call.1} parent=1 // pred_check_branch
      %20 = sbr.rel (0) target = $region9
    $region8: #{tpu_custom_call.1} parent=1 // pred_region
      %22 = dma.done [#allocation3], 64
    $region9: #{tpu_custom_call.1} parent=1 // pred_fallthru
      _
    %v23 = vld [vmem:[#allocation2] sm:$0xf]
    %v24 = vlaneseq
    %v25 = vand.u32 %v24, 127
    %v26 = vadd.s32 %v25, 128
    %vm27 = vcmp.lt.s32.totalorder %v25, 0
    %v28 = vsub.s32 0, %v25
    %v29 = vsel %vm27, %v28, %v25
    %v30 = vshrl.u32 %v29, 4
    %v31 = vand.u32 %v29, 15
    %v32 = vsub.s32 0, %v31
    %v33 = vsel %vm27, %v32, %v31
    %vm34 = vcmp.lt.s32.totalorder %v26, 0
    %v35 = vsub.s32 0, %v26
    %v36 = vsel %vm34, %v35, %v26
    %v37 = vshrl.u32 %v36, 4
    %v38 = vand.u32 %v36, 15
    %v39 = vsub.s32 0, %v38
    %v40 = vsel %vm34, %v39, %v38
    %vm41 = vcmp.ne.s32.totalorder %v33, 0
    %vm42 = vcmp.ne.s32.totalorder %v40, 0
    %vm43 = vcmp.lt.s32.totalorder %v33, 0
    %vm44 = vcmp.lt.s32.totalorder %v40, 0
    %vm45 = vmand %vm43, %vm41
    %vm46 = vmand %vm44, %vm42
    %v47 = vadd.s32 %v33, 16
    %v48 = vadd.s32 %v40, 16
    %v49 = vsel %vm45, %v47, %v33
    %v50 = vsel %vm46, %v48, %v40
    %vm51 = vcmp.lt.s32.totalorder %v25, 16
    %vm52 = vcmp.lt.s32.totalorder %v26, 16
    %54 = vst [vmem:[#allocation1] ss:$4 sm:$0xff] %v23
    %v55 = vld.sshfl [vmem:[#allocation1] sm:$0xff pattern:$0x73625140]
    %v56 = vld.sshfl [vmem:[#allocation1 + $0x8] sm:$0xff pattern:$0x73625140]
    %59 = vrot.lane.b32.xlu0 %v55, 16
    %v60 = vpop.permute.xlu0 %59
    %61 = vrot.lane.b32.xlu0 %v56, 16
    %v62 = vpop.permute.xlu0 %61
    %v63 = vsel %vm51, %v60, %v62
    %v64 = vsel %vm51, %v62, %v60
    %v65 = vsel %vm51, 0.0, %v64
    %v66 = vsel %vm52, 0.0, %v63
    %vm67 = vcmp.ge.s32.totalorder %v25, 240
    %vm68 = vcmp.ge.s32.totalorder %v26, 240
    %69 = vst [vmem:[#allocation1] ss:$4 sm:$0xff] %v23
    %v70 = vld.sshfl [vmem:[#allocation1] sm:$0xff pattern:$0x73625140]
    %v71 = vld.sshfl [vmem:[#allocation1 + $0x8] sm:$0xff pattern:$0x73625140]
    %74 = vrot.lane.b32.xlu0 %v70, 112
    %v75 = vpop.permute.xlu0 %74
    %76 = vrot.lane.b32.xlu0 %v71, 112
    %v77 = vpop.permute.xlu0 %76
    %vm78 = vcmp.lt.s32.totalorder %v25, 112
    %v79 = vsel %vm78, %v75, %v77
    %v80 = vsel %vm78, %v77, %v75
    %v81 = vsel %vm67, 0.0, %v79
    %v82 = vsel %vm68, 0.0, %v80
    %v83 = vmul.f32 %v23, 2.0
    %85 = vst [vmem:[#allocation1] ss:$4 sm:$0xff] %v83
    %v86 = vld.sshfl [vmem:[#allocation1] sm:$0xff pattern:$0x73625140]
    %v87 = vld.sshfl [vmem:[#allocation1 + $0x8] sm:$0xff pattern:$0x73625140]
    %v90 = vadd.f32 %v65, %v86
    %v91 = vadd.f32 %v66, %v87
    %v92 = vadd.f32 %v90, %v81
    %v93 = vadd.f32 %v91, %v82
    %v94 = vsub.f32 %v81, %v65
    %v95 = vsub.f32 %v82, %v66
    %vm96 = vcmp.eq.s32.totalorder %v49, 0
    %vm97 = vcmp.eq.s32.totalorder %v50, 0
    %vm98 = vcmp.eq.s32.totalorder %v49, 15
    %vm99 = vcmp.eq.s32.totalorder %v50, 15
    %100 = vrot.lane.b32.xlu0 %v92, 1
    %v101 = vpop.permute.xlu0 %100
    %102 = vrot.lane.b32.xlu0 %v93, 1
    %v103 = vpop.permute.xlu0 %102
    %vm104 = vcmp.lt.s32.totalorder %v25, 1
    %v105 = vsel %vm104, %v101, %v103
    %v106 = vsel %vm104, %v103, %v101
    %v107 = vsel %vm96, 0.0, %v106
    %v108 = vsel %vm97, 0.0, %v105
    %109 = vrot.lane.b32.xlu0 %v92, 127
    %v110 = vpop.permute.xlu0 %109
    %111 = vrot.lane.b32.xlu0 %v93, 127
    %v112 = vpop.permute.xlu0 %111
    %vm113 = vcmp.lt.s32.totalorder %v25, 127
    %v114 = vsel %vm113, %v110, %v112
    %v115 = vsel %vm113, %v112, %v110
    %v116 = vsel %vm98, 0.0, %v114
    %v117 = vsel %vm99, 0.0, %v115
    %118 = vrot.lane.b32.xlu0 %v94, 1
    %v119 = vpop.permute.xlu0 %118
    %120 = vrot.lane.b32.xlu0 %v95, 1
    %v121 = vpop.permute.xlu0 %120
    %v122 = vsel %vm104, %v119, %v121
    %v123 = vsel %vm104, %v121, %v119
    %v124 = vsel %vm96, 0.0, %v123
    %v125 = vsel %vm97, 0.0, %v122
    %126 = vrot.lane.b32.xlu0 %v94, 127
    %v127 = vpop.permute.xlu0 %126
    %128 = vrot.lane.b32.xlu0 %v95, 127
    %v129 = vpop.permute.xlu0 %128
    %v130 = vsel %vm113, %v127, %v129
    %v131 = vsel %vm113, %v129, %v127
    %v132 = vsel %vm98, 0.0, %v130
    %v133 = vsel %vm99, 0.0, %v131
    %v134 = vsub.f32 %v116, %v107
    %v135 = vsub.f32 %v117, %v108
    %v136 = vmul.f32 %v94, 2.0
    %v137 = vmul.f32 %v95, 2.0
    %v138 = vadd.f32 %v124, %v136
    %v139 = vadd.f32 %v125, %v137
    %v140 = vadd.f32 %v138, %v132
    %v141 = vadd.f32 %v139, %v133
    %v142 = vmul.f32 %v134, %v134
    %v143 = vmul.f32 %v135, %v135
    %v144 = vmul.f32 %v140, %v140
    %v145 = vmul.f32 %v141, %v141
    %v146 = vadd.f32 %v142, %v144
    %v147 = vadd.f32 %v143, %v145
    %v148 = vadd.f32 %v146, 1e-06
    %v149 = vadd.f32 %v147, 1e-06
    %v150 = vrsqrt.pop %v148
    %v151 = vmul.f32 %v150, %v148
    %v152 = vmul.f32 %v151, %v150
    %v153 = vmul.f32 0.5, %v152
    %v154 = vsub.f32 1.5, %v153
    %v155 = vmul.f32 %v150, %v154
    %v156 = vmul.f32 %v148, %v155
    %vm157 = vcmp.eq.f32.partialorder %v148, inf
    %v158 = vsel %vm157, %v148, %v156
    %vm159 = vcmp.eq.f32.partialorder %v148, 0.0
    %v160 = vand.u32 %v148, 2147483648
    %v161 = vsel %vm159, %v160, %v158
    %v162 = vrsqrt.pop %v149
    %v163 = vmul.f32 %v162, %v149
    %v164 = vmul.f32 %v163, %v162
    %v165 = vmul.f32 0.5, %v164
    %v166 = vsub.f32 1.5, %v165
    %v167 = vmul.f32 %v162, %v166
    %v168 = vmul.f32 %v149, %v167
    %vm169 = vcmp.eq.f32.partialorder %v149, inf
    %v170 = vsel %vm169, %v149, %v168
    %vm171 = vcmp.eq.f32.partialorder %v149, 0.0
    %v172 = vand.u32 %v149, 2147483648
    %v173 = vsel %vm171, %v172, %v170
    %v176 = vrot.slane %v173, 6
    %vm177 = vcmask 1041408
    %v178 = vsel %vm177, %v161, %v176
    %180 = vst [vmem:[#allocation5] sm:$0xf] %v178
    // Predicated region
    $region10: #{tpu_custom_call.1} parent=1 // pred_check
      _
    $region11: #{tpu_custom_call.1} parent=1 // pred_check_branch
      %182 = sbr.rel (0) target = $region13
    $region12: #{tpu_custom_call.1} parent=1 // pred_region
      %184 = vsyncadd [#allocation4], 0
      %s186 = sshll.u32 [#allocation5], 4
      %s187 = int_to_ptr.vmem [resolvable:$true] %s186
      %s188 = sshll.u32 %s1, 4
      %s189 = int_to_ptr.hbm [resolvable:$true] %s188
      %191 = dma.vmem_to_hbm [thread:$0]  %s187, 64, %s189, [#allocation4]
    $region13: #{tpu_custom_call.1} parent=1 // pred_fallthru
      _
    // Predicated region
    $region14: #{tpu_custom_call.1} parent=1 // pred_check
      _
    $region15: #{tpu_custom_call.1} parent=1 // pred_check_branch
      %193 = sbr.rel (0) target = $region17
    $region16: #{tpu_custom_call.1} parent=1 // pred_region
      %195 = dma.done [#allocation4], 64
    $region17: #{tpu_custom_call.1} parent=1 // pred_fallthru
      _
    %196 = vsyncpa [#allocation3], 1
    %197 = vsyncpa [#allocation4], 1

</llo_original>
